<compile_context>
chip_gen: v6e
topology: v6e:2x2x1
jax: 0.10.0
libtpu: 0.0.40
codegen_flags: <defaults>
</compile_context>

<pallas_src>
import functools

import jax
import jax.numpy as jnp
from jax.experimental import pallas as pl
from jax.experimental.pallas import tpu as pltpu

HID1, HID2, HID3 = 256, 128, 100
LANE = 128
NEG = -1e30  # bias for padded classes -> exp() underflows to exactly 0


def _round_up(x, m):
    return (x + m - 1) // m * m


def mlp_softmax_kernel(x_ref, w1_ref, b1_ref, w2_ref, b2_ref,
                       w3_ref, b3_ref, w4_ref, b4_ref, o_ref):
    # fc1 + relu  (bf16 MXU operands, f32 accumulation; epilogue in f32)
    h = jnp.dot(x_ref[...].astype(jnp.bfloat16), w1_ref[...],
                preferred_element_type=jnp.float32)
    h = jnp.maximum(h + b1_ref[...], 0.0)
    # fc2 + relu
    h = jnp.dot(h.astype(jnp.bfloat16), w2_ref[...],
                preferred_element_type=jnp.float32)
    h = jnp.maximum(h + b2_ref[...], 0.0)
    # fc3 + relu (HID3 padded 100 -> 128; padded units are exactly 0 after relu)
    h = jnp.dot(h.astype(jnp.bfloat16), w3_ref[...],
                preferred_element_type=jnp.float32)
    h = jnp.maximum(h + b3_ref[...], 0.0)
    # fc4 logits (classes padded to 128; padded logits = -1e30 via the bias)
    logits = jnp.dot(h.astype(jnp.bfloat16), w4_ref[...],
                     preferred_element_type=jnp.float32)
    logits = logits + b4_ref[...]
    # max-stabilized softmax over the (lane-dense, 128-wide) class axis
    m = jnp.max(logits, axis=1, keepdims=True)
    e = jnp.exp(logits - m)
    denom = jnp.sum(e, axis=1, keepdims=True)
    # Exact divide: denom is only (tile, 1), and the approx EUP reciprocal
    # broke strict row-sum normalization (rows summed to 1 +- ~1e-3).
    o_ref[...] = (e / denom).astype(o_ref.dtype)


@functools.partial(
    jax.jit, static_argnames=("cls_num", "bm", "out_dtype", "slice_output"))
def mlp_forward(x, packed, *, cls_num, bm=1024, out_dtype=jnp.float32,
                slice_output=True):
    """x: (B, input_dim) f32 (or bf16). packed: lane-padded params."""
    B, D = x.shape

    # --- batch tiling ------------------------------------------------------
    # * big batches: bm-row tiles (bm=1024 amortizes per-step overhead and is
    #   a multiple of 128 so it maps well to every MXU generation).
    # * mid-size batches (512..bm): split into >=2 grid steps so the
    #   "parallel" batch axis can be sharded across v7x's two TensorCores.
    # * small batches: one grid step, zero per-step overhead.
    Bp = _round_up(B, 8)
    if Bp > bm:
        tile = bm
    elif Bp >= 512:
        tile = _round_up((Bp + 1) // 2, 8)
    else:
        tile = Bp
    Bp = _round_up(Bp, tile)
    if Bp != B:
        x = jnp.pad(x, ((0, Bp - B), (0, 0)))

    w1, b1 = packed["w1"], packed["b1"]
    w2, b2 = packed["w2"], packed["b2"]
    w3, b3 = packed["w3"], packed["b3"]
    w4, b4 = packed["w4"], packed["b4"]

    # Weights/biases: whole array resident in VMEM, constant block index so
    # they are not re-DMA'd across grid steps.  (pl.Buffered(1) deliberately
    # not used to keep lowering risk at zero; the VMEM saving is ~300 KB.)
    full = lambda a: pl.BlockSpec(a.shape, lambda i: (0, 0))

    # Only raise the scoped-VMEM limit when the tile is pushed past the
    # default-safe regime (matters first on v5e's 16 MiB default).
    vmem_limit = (48 << 20) if tile > 1024 else None

    out = pl.pallas_call(
        mlp_softmax_kernel,
        out_shape=jax.ShapeDtypeStruct((Bp, LANE), out_dtype),
        grid_spec=pltpu.PrefetchScalarGridSpec(
            num_scalar_prefetch=0,
            grid=(Bp // tile,),
            in_specs=[
                pl.BlockSpec((tile, D), lambda i: (i, 0)),   # x tile
                full(w1), full(b1),
                full(w2), full(b2),
                full(w3), full(b3),
                full(w4), full(b4),
            ],
            out_specs=pl.BlockSpec((tile, LANE), lambda i: (i, 0)),
        ),
        compiler_params=pltpu.CompilerParams(
            dimension_semantics=("parallel",),   # batch axis across TCs (v7x)
            vmem_limit_bytes=vmem_limit),
    )(x, w1, b1, w2, b2, w3, b3, w4, b4)

    if slice_output:
        return out[:B, :cls_num]
    # Padded (Bp, 128) probabilities; rows >= B and classes >= cls_num are
    # garbage/zero. Lets the caller fuse the slice downstream instead of
    # paying an extra full-buffer HBM pass here.
    return out


def init_params(key, input_dim, cls_num):
    """nn.Linear-style init (uniform +-1/sqrt(fan_in)), weights stored as W.T."""
    dims = [(input_dim, HID1), (HID1, HID2), (HID2, HID3), (HID3, cls_num)]
    params = {}
    for idx, (fan_in, fan_out) in enumerate(dims, start=1):
        key, kw, kb = jax.random.split(key, 3)
        bound = 1.0 / (fan_in ** 0.5)
        params[f"w{idx}"] = jax.random.uniform(
            kw, (fan_in, fan_out), jnp.float32, -bound, bound)
        params[f"b{idx}"] = jax.random.uniform(
            kb, (1, fan_out), jnp.float32, -bound, bound)
    return params


def pack_params(params, cls_num):
    """Lane-pad HID3 and cls_num to 128 and cast matmul weights to bf16.

    Padded HID3 units: zero weight columns + zero bias -> relu output 0, and
    zero rows in w4 -> no effect on logits.
    Padded classes: zero weight columns + bias NEG -> softmax prob exactly 0.
    """
    hid3_p = _round_up(HID3, LANE)
    cls_p = _round_up(cls_num, LANE)
    w3 = jnp.pad(params["w3"], ((0, 0), (0, hid3_p - HID3)))
    b3 = jnp.pad(params["b3"], ((0, 0), (0, hid3_p - HID3)))
    w4 = jnp.pad(params["w4"], ((0, hid3_p - HID3), (0, cls_p - cls_num)))
    b4 = jnp.pad(params["b4"], ((0, 0), (0, cls_p - cls_num)),
                 constant_values=NEG)
    bf = lambda w: w.astype(jnp.bfloat16)
    return {
        "w1": bf(params["w1"]), "b1": params["b1"],
        "w2": bf(params["w2"]), "b2": params["b2"],
        "w3": bf(w3), "b3": b3,
        "w4": bf(w4), "b4": b4,
    }


def mlp_forward_ref(x, packed, cls_num):
    """Pure-JAX reference with the same bf16/padding semantics as the kernel."""
    def layer(h, w, b, relu=True):
        z = jnp.dot(h.astype(jnp.bfloat16), w,
                    preferred_element_type=jnp.float32) + b
        return jnp.maximum(z, 0.0) if relu else z
    h = layer(x, packed["w1"], packed["b1"])
    h = layer(h, packed["w2"], packed["b2"])
    h = layer(h, packed["w3"], packed["b3"])
    logits = layer(h, packed["w4"], packed["b4"], relu=False)
    return jax.nn.softmax(logits, axis=1)[:, :cls_num]


def mlp_forward_ref_f32(x, params):
    """Full-precision (f32, unpadded) reference for a loose sanity check."""
    h = jnp.maximum(x @ params["w1"] + params["b1"], 0.0)
    h = jnp.maximum(h @ params["w2"] + params["b2"], 0.0)
    h = jnp.maximum(h @ params["w3"] + params["b3"], 0.0)
    logits = h @ params["w4"] + params["b4"]
    return jax.nn.softmax(logits, axis=1)


if __name__ == "__main__":
    key = jax.random.PRNGKey(0)
    kx, kx2, kp = jax.random.split(key, 3)

    B, INPUT_DIM, CLS_NUM = 16, 32, 10
    x = jax.random.normal(kx, (B, INPUT_DIM), jnp.float32)
    params = init_params(kp, INPUT_DIM, CLS_NUM)
    packed = pack_params(params, CLS_NUM)

    # --- small batch: single grid step ------------------------------------
    out = mlp_forward(x, packed, cls_num=CLS_NUM)
    out = jax.block_until_ready(out)

    ref = mlp_forward_ref(x, packed, CLS_NUM)      # same bf16 semantics
    ref32 = mlp_forward_ref_f32(x, params)         # f32 sanity reference

    assert out.shape == (B, CLS_NUM)
    assert jnp.allclose(out, ref, atol=2e-3, rtol=0), \
        float(jnp.max(jnp.abs(out - ref)))
    assert jnp.allclose(out, ref32, atol=5e-2, rtol=0)
    # softmax rows sum to 1 (exact divide; padded classes contribute exactly 0)
    assert jnp.allclose(jnp.sum(out, axis=1), jnp.ones((B,)), atol=1e-4)

    # --- mid-size batch: exercises the >=2-grid-step (two-TC) path + row pad
    B2 = 520
    x2 = jax.random.normal(kx2, (B2, INPUT_DIM), jnp.float32)
    out2 = jax.block_until_ready(mlp_forward(x2, packed, cls_num=CLS_NUM))
    ref2 = mlp_forward_ref(x2, packed, CLS_NUM)
    assert out2.shape == (B2, CLS_NUM)
    assert jnp.allclose(out2, ref2, atol=2e-3, rtol=0), \
        float(jnp.max(jnp.abs(out2 - ref2)))
    assert jnp.allclose(jnp.sum(out2, axis=1), jnp.ones((B2,)), atol=1e-4)

    print("KERNEL_OK")
</pallas_src>

<mosaic_0001>
module attributes {stable_mosaic.version = 11 : i64} {
  func.func @mlp_softmax_kernel(%arg0: i32, %arg1: memref<16x32xf32, #tpu.memory_space<vmem>>, %arg2: memref<32x256xbf16, #tpu.memory_space<vmem>>, %arg3: memref<1x256xf32, #tpu.memory_space<vmem>>, %arg4: memref<256x128xbf16, #tpu.memory_space<vmem>>, %arg5: memref<1x128xf32, #tpu.memory_space<vmem>>, %arg6: memref<128x128xbf16, #tpu.memory_space<vmem>>, %arg7: memref<1x128xf32, #tpu.memory_space<vmem>>, %arg8: memref<128x128xbf16, #tpu.memory_space<vmem>>, %arg9: memref<1x128xf32, #tpu.memory_space<vmem>>, %arg10: memref<16x128xf32, #tpu.memory_space<vmem>>) attributes {dimension_semantics = [#tpu.dimension_semantics<parallel>], iteration_bounds = array<i64: 1>, scalar_prefetch = 0 : i64, scratch_operands = 0 : i64, tpu.core_type = #tpu.core_type<tc>, window_params = [{transform_indices = @transform_0, window_bounds = array<i64: 16, 32>}, {pipeline_mode = #tpu.pipeline_mode<synchronous>, transform_indices = @transform_1, window_bounds = array<i64: 32, 256>}, {pipeline_mode = #tpu.pipeline_mode<synchronous>, transform_indices = @transform_2, window_bounds = array<i64: 1, 256>}, {pipeline_mode = #tpu.pipeline_mode<synchronous>, transform_indices = @transform_3, window_bounds = array<i64: 256, 128>}, {pipeline_mode = #tpu.pipeline_mode<synchronous>, transform_indices = @transform_4, window_bounds = array<i64: 1, 128>}, {pipeline_mode = #tpu.pipeline_mode<synchronous>, transform_indices = @transform_5, window_bounds = array<i64: 128, 128>}, {pipeline_mode = #tpu.pipeline_mode<synchronous>, transform_indices = @transform_6, window_bounds = array<i64: 1, 128>}, {pipeline_mode = #tpu.pipeline_mode<synchronous>, transform_indices = @transform_7, window_bounds = array<i64: 128, 128>}, {pipeline_mode = #tpu.pipeline_mode<synchronous>, transform_indices = @transform_8, window_bounds = array<i64: 1, 128>}, {transform_indices = @transform_9, window_bounds = array<i64: 16, 128>}]} {
    %c0 = arith.constant 0 : index
    %c0_0 = arith.constant 0 : index
    %0 = vector.load %arg1[%c0, %c0_0] : memref<16x32xf32, #tpu.memory_space<vmem>>, vector<16x32xf32>
    %1 = arith.truncf %0 : vector<16x32xf32> to vector<16x32xbf16>
    %c0_1 = arith.constant 0 : index
    %c0_2 = arith.constant 0 : index
    %2 = vector.load %arg2[%c0_1, %c0_2] : memref<32x256xbf16, #tpu.memory_space<vmem>>, vector<32x256xbf16>
    %cst = arith.constant dense<0.000000e+00> : vector<16x256xf32>
    %3 = tpu.matmul %1, %2, %cst {dimension_numbers = #tpu.dot_dimension_numbers<[1], [0], [0], [1], [0, 0, 1, 1], [], []>} : vector<16x32xbf16>, vector<32x256xbf16>, vector<16x256xf32> -> vector<16x256xf32>
    %c0_3 = arith.constant 0 : index
    %c0_4 = arith.constant 0 : index
    %4 = vector.load %arg3[%c0_3, %c0_4] : memref<1x256xf32, #tpu.memory_space<vmem>>, vector<1x256xf32>
    %5 = vector.broadcast %4 : vector<1x256xf32> to vector<16x256xf32>
    %6 = arith.addf %3, %5 : vector<16x256xf32>
    %cst_5 = arith.constant 0.000000e+00 : f32
    %7 = vector.broadcast %cst_5 : f32 to vector<16x256xf32>
    %8 = arith.maximumf %6, %7 : vector<16x256xf32>
    %9 = arith.truncf %8 : vector<16x256xf32> to vector<16x256xbf16>
    %c0_6 = arith.constant 0 : index
    %c0_7 = arith.constant 0 : index
    %10 = vector.load %arg4[%c0_6, %c0_7] : memref<256x128xbf16, #tpu.memory_space<vmem>>, vector<256x128xbf16>
    %cst_8 = arith.constant dense<0.000000e+00> : vector<16x128xf32>
    %11 = tpu.matmul %9, %10, %cst_8 {dimension_numbers = #tpu.dot_dimension_numbers<[1], [0], [0], [1], [0, 0, 1, 1], [], []>} : vector<16x256xbf16>, vector<256x128xbf16>, vector<16x128xf32> -> vector<16x128xf32>
    %c0_9 = arith.constant 0 : index
    %c0_10 = arith.constant 0 : index
    %12 = vector.load %arg5[%c0_9, %c0_10] : memref<1x128xf32, #tpu.memory_space<vmem>>, vector<1x128xf32>
    %13 = vector.broadcast %12 : vector<1x128xf32> to vector<16x128xf32>
    %14 = arith.addf %11, %13 : vector<16x128xf32>
    %cst_11 = arith.constant 0.000000e+00 : f32
    %15 = vector.broadcast %cst_11 : f32 to vector<16x128xf32>
    %16 = arith.maximumf %14, %15 : vector<16x128xf32>
    %17 = arith.truncf %16 : vector<16x128xf32> to vector<16x128xbf16>
    %c0_12 = arith.constant 0 : index
    %c0_13 = arith.constant 0 : index
    %18 = vector.load %arg6[%c0_12, %c0_13] : memref<128x128xbf16, #tpu.memory_space<vmem>>, vector<128x128xbf16>
    %cst_14 = arith.constant dense<0.000000e+00> : vector<16x128xf32>
    %19 = tpu.matmul %17, %18, %cst_14 {dimension_numbers = #tpu.dot_dimension_numbers<[1], [0], [0], [1], [0, 0, 1, 1], [], []>} : vector<16x128xbf16>, vector<128x128xbf16>, vector<16x128xf32> -> vector<16x128xf32>
    %c0_15 = arith.constant 0 : index
    %c0_16 = arith.constant 0 : index
    %20 = vector.load %arg7[%c0_15, %c0_16] : memref<1x128xf32, #tpu.memory_space<vmem>>, vector<1x128xf32>
    %21 = vector.broadcast %20 : vector<1x128xf32> to vector<16x128xf32>
    %22 = arith.addf %19, %21 : vector<16x128xf32>
    %cst_17 = arith.constant 0.000000e+00 : f32
    %23 = vector.broadcast %cst_17 : f32 to vector<16x128xf32>
    %24 = arith.maximumf %22, %23 : vector<16x128xf32>
    %25 = arith.truncf %24 : vector<16x128xf32> to vector<16x128xbf16>
    %c0_18 = arith.constant 0 : index
    %c0_19 = arith.constant 0 : index
    %26 = vector.load %arg8[%c0_18, %c0_19] : memref<128x128xbf16, #tpu.memory_space<vmem>>, vector<128x128xbf16>
    %cst_20 = arith.constant dense<0.000000e+00> : vector<16x128xf32>
    %27 = tpu.matmul %25, %26, %cst_20 {dimension_numbers = #tpu.dot_dimension_numbers<[1], [0], [0], [1], [0, 0, 1, 1], [], []>} : vector<16x128xbf16>, vector<128x128xbf16>, vector<16x128xf32> -> vector<16x128xf32>
    %c0_21 = arith.constant 0 : index
    %c0_22 = arith.constant 0 : index
    %28 = vector.load %arg9[%c0_21, %c0_22] : memref<1x128xf32, #tpu.memory_space<vmem>>, vector<1x128xf32>
    %29 = vector.broadcast %28 : vector<1x128xf32> to vector<16x128xf32>
    %30 = arith.addf %27, %29 : vector<16x128xf32>
    %cst_23 = arith.constant dense<0xFF800000> : vector<16xf32>
    %31 = vector.multi_reduction <maximumf>, %30, %cst_23 [1] : vector<16x128xf32> to vector<16xf32>
    %32 = vector.shape_cast %31 : vector<16xf32> to vector<16x1xf32>
    %33 = vector.broadcast %32 : vector<16x1xf32> to vector<16x128xf32>
    %34 = arith.subf %30, %33 : vector<16x128xf32>
    %35 = math.exp %34 : vector<16x128xf32>
    %cst_24 = arith.constant dense<0.000000e+00> : vector<16xf32>
    %36 = vector.multi_reduction <add>, %35, %cst_24 [1] : vector<16x128xf32> to vector<16xf32>
    %37 = vector.shape_cast %36 : vector<16xf32> to vector<16x1xf32>
    %38 = vector.broadcast %37 : vector<16x1xf32> to vector<16x128xf32>
    %39 = arith.divf %35, %38 : vector<16x128xf32>
    %c0_25 = arith.constant 0 : index
    %c0_26 = arith.constant 0 : index
    %40 = vector.load %arg10[%c0_25, %c0_26] : memref<16x128xf32, #tpu.memory_space<vmem>>, vector<16x128xf32>
    tpu.vector_store %arg10[%c0_25, %c0_26], %39 {strides = array<i32>} : memref<16x128xf32, #tpu.memory_space<vmem>>, vector<16x128xf32>,
    return
  }
  func.func @transform_0(%arg0: i32) -> (i32, i32) {
    %c0_i32 = arith.constant 0 : i32
    %c0_i32_0 = arith.constant 0 : i32
    return %arg0, %c0_i32 : i32, i32
  }
  func.func @transform_1(%arg0: i32) -> (i32, i32) {
    %c0_i32 = arith.constant 0 : i32
    %c0_i32_0 = arith.constant 0 : i32
    %c0_i32_1 = arith.constant 0 : i32
    return %c0_i32, %c0_i32_0 : i32, i32
  }
  func.func @transform_2(%arg0: i32) -> (i32, i32) {
    %c0_i32 = arith.constant 0 : i32
    %c0_i32_0 = arith.constant 0 : i32
    %c0_i32_1 = arith.constant 0 : i32
    return %c0_i32, %c0_i32_0 : i32, i32
  }
  func.func @transform_3(%arg0: i32) -> (i32, i32) {
    %c0_i32 = arith.constant 0 : i32
    %c0_i32_0 = arith.constant 0 : i32
    %c0_i32_1 = arith.constant 0 : i32
    return %c0_i32, %c0_i32_0 : i32, i32
  }
  func.func @transform_4(%arg0: i32) -> (i32, i32) {
    %c0_i32 = arith.constant 0 : i32
    %c0_i32_0 = arith.constant 0 : i32
    %c0_i32_1 = arith.constant 0 : i32
    return %c0_i32, %c0_i32_0 : i32, i32
  }
  func.func @transform_5(%arg0: i32) -> (i32, i32) {
    %c0_i32 = arith.constant 0 : i32
    %c0_i32_0 = arith.constant 0 : i32
    %c0_i32_1 = arith.constant 0 : i32
    return %c0_i32, %c0_i32_0 : i32, i32
  }
  func.func @transform_6(%arg0: i32) -> (i32, i32) {
    %c0_i32 = arith.constant 0 : i32
    %c0_i32_0 = arith.constant 0 : i32
    %c0_i32_1 = arith.constant 0 : i32
    return %c0_i32, %c0_i32_0 : i32, i32
  }
  func.func @transform_7(%arg0: i32) -> (i32, i32) {
    %c0_i32 = arith.constant 0 : i32
    %c0_i32_0 = arith.constant 0 : i32
    %c0_i32_1 = arith.constant 0 : i32
    return %c0_i32, %c0_i32_0 : i32, i32
  }
  func.func @transform_8(%arg0: i32) -> (i32, i32) {
    %c0_i32 = arith.constant 0 : i32
    %c0_i32_0 = arith.constant 0 : i32
    %c0_i32_1 = arith.constant 0 : i32
    return %c0_i32, %c0_i32_0 : i32, i32
  }
  func.func @transform_9(%arg0: i32) -> (i32, i32) {
    %c0_i32 = arith.constant 0 : i32
    %c0_i32_0 = arith.constant 0 : i32
    return %arg0, %c0_i32 : i32, i32
  }
}

</mosaic_0001>

<llo_original>
// kernel: mlp_forward.1
$region0: #{mlp_forward.1}
  #allocation0 [shape = 'u32[]', space=smem, size = 0x4, offset = 0x4, fixed_abs, tag = 'smem constant byte address 0x4 - core index']
  #allocation1 [shape = 'u32[144,128]{1,0:T(1,128)}', space=vmem, size = 0x12000, scoped, tag = 'internal scratch']
  %s0 = inlined_call_operand.hbm [shape: f32[16,32], index: 0, kind: input, shape index: {}]
  %s1 = inlined_call_operand.hbm [shape: bf16[32,256], index: 1, kind: input, shape index: {}]
  %s2 = inlined_call_operand.hbm [shape: f32[1,256], index: 2, kind: input, shape index: {}]
  %s3 = inlined_call_operand.hbm [shape: bf16[256,128], index: 3, kind: input, shape index: {}]
  %s4 = inlined_call_operand.vmem [shape: f32[1,128], index: 4, kind: input, shape index: {}]
  %s5 = inlined_call_operand.hbm [shape: bf16[128,128], index: 5, kind: input, shape index: {}]
  %s6 = inlined_call_operand.vmem [shape: f32[1,128], index: 6, kind: input, shape index: {}]
  %s7 = inlined_call_operand.hbm [shape: bf16[128,128], index: 7, kind: input, shape index: {}]
  %s8 = inlined_call_operand.vmem [shape: f32[1,128], index: 8, kind: input, shape index: {}]
  %s9 = inlined_call_operand.hbm [shape: f32[16,128], index: 9, kind: output, shape index: {}]
  %s10 = sld [smem:[#allocation0]]
  $region70: #{mlp_forward.1} parent=0
    _
  %s12 = ssub.s32 1, %s10
  %s13 = scalar_select 0, %s12, %s10
  $region1: #{mlp_forward.1} parent=0
    #allocation2 [shape = 'u8[8192]{0}', space=vmem, size = 0x2000, scoped, tag = 'input window, operand 0, single buffered']
    #allocation3 [shape = 's32[1]{0}', space=sflag, size = 0x4, scoped, tag = 'scoped memory for mlp_forward.1']
    #allocation4 [shape = 's32[1]{0}', space=sflag, size = 0x4, scoped, tag = 'scoped memory for mlp_forward.1']
    #allocation5 [shape = 'u8[16384]{0}', space=vmem, size = 0x4000, scoped, tag = 'input window, operand 1, single buffered']
    #allocation6 [shape = 's32[1]{0}', space=sflag, size = 0x4, scoped, tag = 'scoped memory for mlp_forward.1']
    #allocation7 [shape = 'u8[1024]{0}', space=vmem, size = 0x400, scoped, tag = 'input window, operand 2, single buffered']
    #allocation8 [shape = 'u8[65536]{0}', space=vmem, size = 0x10000, scoped, tag = 'input window, operand 3, single buffered']
    #allocation9 [shape = 's32[1]{0}', space=sflag, size = 0x4, scoped, tag = 'scoped memory for mlp_forward.1']
    #allocation10 [shape = 'u8[32768]{0}', space=vmem, size = 0x8000, scoped, tag = 'input window, operand 5, single buffered']
    #allocation11 [shape = 'u8[32768]{0}', space=vmem, size = 0x8000, scoped, tag = 'input window, operand 7, single buffered']
    #allocation12 [shape = 's32[1]{0}', space=sflag, size = 0x4, scoped, tag = 'scoped memory for mlp_forward.1']
    #allocation13 [shape = 'u8[8192]{0}', space=vmem, size = 0x2000, scoped, tag = 'output window, operand 0, single buffered']
    %14 = vsyncpa [#allocation3], 0
    %15 = vsyncpa [#allocation6], 0
    %16 = vsyncpa [#allocation9], 0
    %17 = vsyncpa [#allocation12], 0
    %18 = vsyncpa [#allocation4], 0
    // Predicated region
    $region2: #{mlp_forward.1} parent=1 // pred_check
      _
    $region3: #{mlp_forward.1} parent=1 // pred_check_branch
      %20 = sbr.rel (0) target = $region5
    $region4: #{mlp_forward.1} parent=1 // pred_region
      %s22 = ssub.s32 256, 256
      %23 = vsyncadd [#allocation3], %s22
      %s24 = sshll.u32 [#allocation2], 4
      %s25 = int_to_ptr.vmem [resolvable:$true] %s24
      %30 = dma.hbm_to_vmem [thread:$0]  %s0, 256, %s25, [#allocation3], 128, 128, 8
    $region5: #{mlp_forward.1} parent=1 // pred_fallthru
      _
    // Predicated region
    $region6: #{mlp_forward.1} parent=1 // pred_check
      _
    $region7: #{mlp_forward.1} parent=1 // pred_check_branch
      %32 = sbr.rel (0) target = $region9
    $region8: #{mlp_forward.1} parent=1 // pred_region
      %s34 = ssub.s32 512, 512
      %35 = vsyncadd [#allocation6], %s34
      %s36 = sshll.u32 [#allocation5], 4
      %s37 = int_to_ptr.vmem [resolvable:$true] %s36
      %42 = dma.hbm_to_vmem [thread:$0]  %s1, 512, %s37, [#allocation6], 128, 128, 8
    $region9: #{mlp_forward.1} parent=1 // pred_fallthru
      _
    // Predicated region
    $region10: #{mlp_forward.1} parent=1 // pred_check
      _
    $region11: #{mlp_forward.1} parent=1 // pred_check_branch
      %44 = sbr.rel (0) target = $region13
    $region12: #{mlp_forward.1} parent=1 // pred_region
      %s46 = ssub.s32 32, 32
      %47 = vsyncadd [#allocation6], %s46
      %s49 = sshll.u32 [#allocation7], 4
      %s50 = int_to_ptr.vmem [resolvable:$true] %s49
      %52 = dma.hbm_to_vmem [thread:$0]  %s2, 32, %s50, [#allocation6]
    $region13: #{mlp_forward.1} parent=1 // pred_fallthru
      _
    // Predicated region
    $region14: #{mlp_forward.1} parent=1 // pred_check
      _
    $region15: #{mlp_forward.1} parent=1 // pred_check_branch
      %54 = sbr.rel (0) target = $region17
    $region16: #{mlp_forward.1} parent=1 // pred_region
      %s56 = ssub.s32 2048, 2048
      %57 = vsyncadd [#allocation9], %s56
      %s58 = sshll.u32 [#allocation8], 4
      %s59 = int_to_ptr.vmem [resolvable:$true] %s58
      %64 = dma.hbm_to_vmem [thread:$0]  %s3, 2048, %s59, [#allocation9], 64, 64, 4
    $region17: #{mlp_forward.1} parent=1 // pred_fallthru
      _
    // Predicated region
    $region18: #{mlp_forward.1} parent=1 // pred_check
      _
    $region19: #{mlp_forward.1} parent=1 // pred_check_branch
      %66 = sbr.rel (0) target = $region21
    $region20: #{mlp_forward.1} parent=1 // pred_region
      _
    $region21: #{mlp_forward.1} parent=1 // pred_fallthru
      _
    // Predicated region
    $region22: #{mlp_forward.1} parent=1 // pred_check
      _
    $region23: #{mlp_forward.1} parent=1 // pred_check_branch
      %68 = sbr.rel (0) target = $region25
    $region24: #{mlp_forward.1} parent=1 // pred_region
      %s70 = ssub.s32 1024, 1024
      %71 = vsyncadd [#allocation9], %s70
      %s72 = sshll.u32 [#allocation10], 4
      %s73 = int_to_ptr.vmem [resolvable:$true] %s72
      %78 = dma.hbm_to_vmem [thread:$0]  %s5, 1024, %s73, [#allocation9], 64, 64, 4
    $region25: #{mlp_forward.1} parent=1 // pred_fallthru
      _
    // Predicated region
    $region26: #{mlp_forward.1} parent=1 // pred_check
      _
    $region27: #{mlp_forward.1} parent=1 // pred_check_branch
      %80 = sbr.rel (0) target = $region29
    $region28: #{mlp_forward.1} parent=1 // pred_region
      _
    $region29: #{mlp_forward.1} parent=1 // pred_fallthru
      _
    // Predicated region
    $region30: #{mlp_forward.1} parent=1 // pred_check
      _
    $region31: #{mlp_forward.1} parent=1 // pred_check_branch
      %82 = sbr.rel (0) target = $region33
    $region32: #{mlp_forward.1} parent=1 // pred_region
      %s84 = ssub.s32 1024, 1024
      %85 = vsyncadd [#allocation12], %s84
      %s86 = sshll.u32 [#allocation11], 4
      %s87 = int_to_ptr.vmem [resolvable:$true] %s86
      %92 = dma.hbm_to_vmem [thread:$0]  %s7, 1024, %s87, [#allocation12], 64, 64, 4
    $region33: #{mlp_forward.1} parent=1 // pred_fallthru
      _
    // Predicated region
    $region34: #{mlp_forward.1} parent=1 // pred_check
      _
    $region35: #{mlp_forward.1} parent=1 // pred_check_branch
      %94 = sbr.rel (0) target = $region37
    $region36: #{mlp_forward.1} parent=1 // pred_region
      _
    $region37: #{mlp_forward.1} parent=1 // pred_fallthru
      _
    // Predicated region
    $region38: #{mlp_forward.1} parent=1 // pred_check
      _
    $region39: #{mlp_forward.1} parent=1 // pred_check_branch
      %96 = sbr.rel (0) target = $region41
    $region40: #{mlp_forward.1} parent=1 // pred_region
      %97 = dma.done [#allocation3], 256
    $region41: #{mlp_forward.1} parent=1 // pred_fallthru
      _
    // Predicated region
    $region42: #{mlp_forward.1} parent=1 // pred_check
      _
    $region43: #{mlp_forward.1} parent=1 // pred_check_branch
      %99 = sbr.rel (0) target = $region45
    $region44: #{mlp_forward.1} parent=1 // pred_region
      %100 = dma.done [#allocation6], 512
    $region45: #{mlp_forward.1} parent=1 // pred_fallthru
      _
    // Predicated region
    $region46: #{mlp_forward.1} parent=1 // pred_check
      _
    $region47: #{mlp_forward.1} parent=1 // pred_check_branch
      %102 = sbr.rel (0) target = $region49
    $region48: #{mlp_forward.1} parent=1 // pred_region
      %103 = dma.done [#allocation6], 32
    $region49: #{mlp_forward.1} parent=1 // pred_fallthru
      _
    // Predicated region
    $region50: #{mlp_forward.1} parent=1 // pred_check
      _
    $region51: #{mlp_forward.1} parent=1 // pred_check_branch
      %105 = sbr.rel (0) target = $region53
    $region52: #{mlp_forward.1} parent=1 // pred_region
      %106 = dma.done [#allocation9], 2048
    $region53: #{mlp_forward.1} parent=1 // pred_fallthru
      _
    // Predicated region
    $region54: #{mlp_forward.1} parent=1 // pred_check
      _
    $region55: #{mlp_forward.1} parent=1 // pred_check_branch
      %108 = sbr.rel (0) target = $region57
    $region56: #{mlp_forward.1} parent=1 // pred_region
      %109 = dma.done [#allocation9], 1024
    $region57: #{mlp_forward.1} parent=1 // pred_fallthru
      _
    // Predicated region
    $region58: #{mlp_forward.1} parent=1 // pred_check
      _
    $region59: #{mlp_forward.1} parent=1 // pred_check_branch
      %111 = sbr.rel (0) target = $region61
    $region60: #{mlp_forward.1} parent=1 // pred_region
      %112 = dma.done [#allocation12], 1024
    $region61: #{mlp_forward.1} parent=1 // pred_fallthru
      _
    %v114 = vld [vmem:[#allocation2] sm:$0xff]
    %v115 = vld [vmem:[#allocation2 + $0x8] sm:$0xff]
    %v116 = vpack.c.bf16 %v115, %v114
    %v117 = vld [vmem:[#allocation5] sm:$0xff]
    %v118 = vld [vmem:[#allocation5 + $0x8] sm:$0xff]
    %v119 = vld [vmem:[#allocation5 + $0x10] sm:$0xff]
    %v120 = vld [vmem:[#allocation5 + $0x18] sm:$0xff]
    %v121 = vld [vmem:[#allocation7] sm:$0x3]
    %v123 = vlaneseq
    %v124 = vshrl.u32 %v123, 7
    %v125 = vsub.s32 0, %v124
    %v126 = vrot.slane %v121, %v125
    %v127 = vlaneseq
    %v128 = vshrl.u32 %v127, 7
    %v129 = vsub.s32 1, %v128
    %v130 = vrot.slane %v121, %v129
    %v137 = vunpack.c.l.b16 %v117
    %v138 = vunpack.c.h.b16 %v117
    %v139 = vunpack.c.l.b16 %v118
    %v140 = vunpack.c.h.b16 %v118
    %v141 = vunpack.c.l.b16 %v119
    %v142 = vunpack.c.h.b16 %v119
    %v143 = vunpack.c.l.b16 %v120
    %v144 = vunpack.c.h.b16 %v120
    %v145 = vpack.c.b16 %v139, %v137
    %v146 = vpack.c.b16 %v140, %v138
    %v147 = vpack.c.b16 %v143, %v141
    %v148 = vpack.c.b16 %v144, %v142
    %vm153 = vcmask 261120
    %v155 = vsel %vm153, %v116, 0
    %157 = vmatprep.subr.bf16.mxu0 0
    %158 = vmatpush1.bf16.msra.mxu0 0
    %159 = vmatprep.subr.bf16.mxu0 0
    %160 = vmatpush1.bf16.msra.mxu0 0
    %161 = vmatprep.subr.bf16.mxu0 0
    %162 = vmatpush1.bf16.msra.mxu0 0
    %163 = vmatprep.subr.bf16.mxu0 0
    %164 = vmatpush1.bf16.msra.mxu0 0
    %165 = vmatprep.subr.bf16.mxu0 0
    %166 = vmatpush1.bf16.msra.mxu0 0
    %167 = vmatprep.subr.bf16.mxu0 0
    %168 = vmatpush1.bf16.msra.mxu0 0
    %169 = vmatprep.subr.bf16.mxu0 %v148
    %170 = vmatpush1.bf16.msra.mxu0 %v147
    %171 = vmatprep.subr.bf16.mxu0 %v146
    %172 = vmatpush1.bf16.msra.mxu0 %v145
    %173 = vmatprep.subr.bf16.mxu0 0
    %174 = vmatpush2.bf16.msra.mxu0 0
    %175 = vmatprep.subr.bf16.mxu0 0
    %176 = vmatpush2.bf16.msra.mxu0 0
    %177 = vmatprep.subr.bf16.mxu0 0
    %178 = vmatpush2.bf16.msra.mxu0 0
    %179 = vmatprep.subr.bf16.mxu0 0
    %180 = vmatpush2.bf16.msra.mxu0 0
    %181 = vmatprep.subr.bf16.mxu0 0
    %182 = vmatpush2.bf16.msra.mxu0 0
    %183 = vmatprep.subr.bf16.mxu0 0
    %184 = vmatpush2.bf16.msra.mxu0 0
    %185 = vmatprep.subr.bf16.mxu0 0
    %186 = vmatpush2.bf16.msra.mxu0 0
    %187 = vmatprep.subr.bf16.mxu0 0
    %188 = vmatpush2.bf16.msra.mxu0 0
    %189 = vmatprep.mubr.bf16.mxu0 0
    %190 = vmatmul.mubr.bf16.gmra.mxu0 %v155
    %v191 = vpop.f32.mrf.mxu0
    %v192 = vadd.f32 %v126, %v191
    %v193 = vpop.f32.mrf.mxu0
    %v194 = vadd.f32 %v130, %v193
    %v195 = vpop.f32.mrf.mxu0
    %v196 = vadd.f32 %v126, %v195
    %v197 = vpop.f32.mrf.mxu0
    %v198 = vadd.f32 %v130, %v197
    %199 = vdwg.mxu0
    %v200 = vmax.f32 %v192, 0.0
    %v201 = vmax.f32 %v194, 0.0
    %v202 = vmax.f32 %v196, 0.0
    %v203 = vmax.f32 %v198, 0.0
    %v204 = vpack.c.bf16 %v202, %v200
    %v205 = vpack.c.bf16 %v203, %v201
    %v206 = vld [vmem:[#allocation8] sm:$0xf]
    %v207 = vld [vmem:[#allocation8 + $0x4] sm:$0xf]
    %v208 = vld [vmem:[#allocation8 + $0x8] sm:$0xf]
    %v209 = vld [vmem:[#allocation8 + $0xc] sm:$0xf]
    %v210 = vld [vmem:[#allocation8 + $0x10] sm:$0xf]
    %v211 = vld [vmem:[#allocation8 + $0x14] sm:$0xf]
    %v212 = vld [vmem:[#allocation8 + $0x18] sm:$0xf]
    %v213 = vld [vmem:[#allocation8 + $0x1c] sm:$0xf]
    %v214 = vld [vmem:[#allocation8 + $0x20] sm:$0xf]
    %v215 = vld [vmem:[#allocation8 + $0x24] sm:$0xf]
    %v216 = vld [vmem:[#allocation8 + $0x28] sm:$0xf]
    %v217 = vld [vmem:[#allocation8 + $0x2c] sm:$0xf]
    %v218 = vld [vmem:[#allocation8 + $0x30] sm:$0xf]
    %v219 = vld [vmem:[#allocation8 + $0x34] sm:$0xf]
    %v220 = vld [vmem:[#allocation8 + $0x38] sm:$0xf]
    %v221 = vld [vmem:[#allocation8 + $0x3c] sm:$0xf]
    %v222 = vld [vmem:[#allocation8 + $0x40] sm:$0xf]
    %v223 = vld [vmem:[#allocation8 + $0x44] sm:$0xf]
    %v224 = vld [vmem:[#allocation8 + $0x48] sm:$0xf]
    %v225 = vld [vmem:[#allocation8 + $0x4c] sm:$0xf]
    %v226 = vld [vmem:[#allocation8 + $0x50] sm:$0xf]
    %v227 = vld [vmem:[#allocation8 + $0x54] sm:$0xf]
    %v228 = vld [vmem:[#allocation8 + $0x58] sm:$0xf]
    %v229 = vld [vmem:[#allocation8 + $0x5c] sm:$0xf]
    %v230 = vld [vmem:[#allocation8 + $0x60] sm:$0xf]
    %v231 = vld [vmem:[#allocation8 + $0x64] sm:$0xf]
    %v232 = vld [vmem:[#allocation8 + $0x68] sm:$0xf]
    %v233 = vld [vmem:[#allocation8 + $0x6c] sm:$0xf]
    %v234 = vld [vmem:[#allocation8 + $0x70] sm:$0xf]
    %v235 = vld [vmem:[#allocation8 + $0x74] sm:$0xf]
    %v236 = vld [vmem:[#allocation8 + $0x78] sm:$0xf]
    %v237 = vld [vmem:[#allocation8 + $0x7c] sm:$0xf]
    %v238 = vld [vmem:[%s4] sm:$0x1]
    %v240 = vlaneseq
    %v241 = vshrl.u32 %v240, 7
    %v242 = vsub.s32 0, %v241
    %v243 = vrot.slane %v238, %v242
    %v277 = vunpack.c.l.b16 %v206
    %v278 = vunpack.c.l.b16 %v207
    %v279 = vunpack.c.l.b16 %v208
    %v280 = vunpack.c.l.b16 %v209
    %v281 = vunpack.c.l.b16 %v210
    %v282 = vunpack.c.l.b16 %v211
    %v283 = vunpack.c.l.b16 %v212
    %v284 = vunpack.c.l.b16 %v213
    %v285 = vunpack.c.l.b16 %v214
    %v286 = vunpack.c.l.b16 %v215
    %v287 = vunpack.c.l.b16 %v216
    %v288 = vunpack.c.l.b16 %v217
    %v289 = vunpack.c.l.b16 %v218
    %v290 = vunpack.c.l.b16 %v219
    %v291 = vunpack.c.l.b16 %v220
    %v292 = vunpack.c.l.b16 %v221
    %v293 = vunpack.c.l.b16 %v222
    %v294 = vunpack.c.l.b16 %v223
    %v295 = vunpack.c.l.b16 %v224
    %v296 = vunpack.c.l.b16 %v225
    %v297 = vunpack.c.l.b16 %v226
    %v298 = vunpack.c.l.b16 %v227
    %v299 = vunpack.c.l.b16 %v228
    %v300 = vunpack.c.l.b16 %v229
    %v301 = vunpack.c.l.b16 %v230
    %v302 = vunpack.c.l.b16 %v231
    %v303 = vunpack.c.l.b16 %v232
    %v304 = vunpack.c.l.b16 %v233
    %v305 = vunpack.c.l.b16 %v234
    %v306 = vunpack.c.l.b16 %v235
    %v307 = vunpack.c.l.b16 %v236
    %v308 = vunpack.c.l.b16 %v237
    %v309 = vpack.c.b16 %v278, %v277
    %v310 = vpack.c.b16 %v280, %v279
    %v311 = vpack.c.b16 %v282, %v281
    %v312 = vpack.c.b16 %v284, %v283
    %v313 = vpack.c.b16 %v286, %v285
    %v314 = vpack.c.b16 %v288, %v287
    %v315 = vpack.c.b16 %v290, %v289
    %v316 = vpack.c.b16 %v292, %v291
    %v317 = vpack.c.b16 %v294, %v293
    %v318 = vpack.c.b16 %v296, %v295
    %v319 = vpack.c.b16 %v298, %v297
    %v320 = vpack.c.b16 %v300, %v299
    %v321 = vpack.c.b16 %v302, %v301
    %v322 = vpack.c.b16 %v304, %v303
    %v323 = vpack.c.b16 %v306, %v305
    %v324 = vpack.c.b16 %v308, %v307
    %341 = vmatprep.subr.bf16.mxu0 0
    %342 = vmatpush1.bf16.msra.mxu0 %v316
    %343 = vmatprep.subr.bf16.mxu0 0
    %344 = vmatpush1.bf16.msra.mxu0 %v315
    %345 = vmatprep.subr.bf16.mxu0 0
    %346 = vmatpush1.bf16.msra.mxu0 %v314
    %347 = vmatprep.subr.bf16.mxu0 0
    %348 = vmatpush1.bf16.msra.mxu0 %v313
    %349 = vmatprep.subr.bf16.mxu0 0
    %350 = vmatpush1.bf16.msra.mxu0 %v312
    %351 = vmatprep.subr.bf16.mxu0 0
    %352 = vmatpush1.bf16.msra.mxu0 %v311
    %353 = vmatprep.subr.bf16.mxu0 0
    %354 = vmatpush1.bf16.msra.mxu0 %v310
    %355 = vmatprep.subr.bf16.mxu0 0
    %356 = vmatpush1.bf16.msra.mxu0 %v309
    %357 = vmatprep.subr.bf16.mxu0 0
    %358 = vmatpush2.bf16.msra.mxu0 %v324
    %359 = vmatprep.subr.bf16.mxu0 0
    %360 = vmatpush2.bf16.msra.mxu0 %v323
    %361 = vmatprep.subr.bf16.mxu0 0
    %362 = vmatpush2.bf16.msra.mxu0 %v322
    %363 = vmatprep.subr.bf16.mxu0 0
    %364 = vmatpush2.bf16.msra.mxu0 %v321
    %365 = vmatprep.subr.bf16.mxu0 0
    %366 = vmatpush2.bf16.msra.mxu0 %v320
    %367 = vmatprep.subr.bf16.mxu0 0
    %368 = vmatpush2.bf16.msra.mxu0 %v319
    %369 = vmatprep.subr.bf16.mxu0 0
    %370 = vmatpush2.bf16.msra.mxu0 %v318
    %371 = vmatprep.subr.bf16.mxu0 0
    %372 = vmatpush2.bf16.msra.mxu0 %v317
    %373 = vmatprep.mubr.bf16.mxu0 %v205
    %374 = vmatmul.mubr.bf16.gmra.mxu0 %v204
    %v375 = vpop.f32.mrf.mxu0
    %v376 = vadd.f32 %v243, %v375
    %v377 = vpop.f32.mrf.mxu0
    %v378 = vpop.f32.mrf.mxu0
    %v379 = vadd.f32 %v243, %v378
    %v380 = vpop.f32.mrf.mxu0
    %381 = vdwg.mxu0
    %v382 = vmax.f32 %v376, 0.0
    %v383 = vmax.f32 %v379, 0.0
    %v384 = vpack.c.bf16 %v383, %v382
    %v385 = vld [vmem:[#allocation10] sm:$0xf]
    %v386 = vld [vmem:[#allocation10 + $0x4] sm:$0xf]
    %v387 = vld [vmem:[#allocation10 + $0x8] sm:$0xf]
    %v388 = vld [vmem:[#allocation10 + $0xc] sm:$0xf]
    %v389 = vld [vmem:[#allocation10 + $0x10] sm:$0xf]
    %v390 = vld [vmem:[#allocation10 + $0x14] sm:$0xf]
    %v391 = vld [vmem:[#allocation10 + $0x18] sm:$0xf]
    %v392 = vld [vmem:[#allocation10 + $0x1c] sm:$0xf]
    %v393 = vld [vmem:[#allocation10 + $0x20] sm:$0xf]
    %v394 = vld [vmem:[#allocation10 + $0x24] sm:$0xf]
    %v395 = vld [vmem:[#allocation10 + $0x28] sm:$0xf]
    %v396 = vld [vmem:[#allocation10 + $0x2c] sm:$0xf]
    %v397 = vld [vmem:[#allocation10 + $0x30] sm:$0xf]
    %v398 = vld [vmem:[#allocation10 + $0x34] sm:$0xf]
    %v399 = vld [vmem:[#allocation10 + $0x38] sm:$0xf]
    %v400 = vld [vmem:[#allocation10 + $0x3c] sm:$0xf]
    %v401 = vld [vmem:[%s6] sm:$0x1]
    %v403 = vlaneseq
    %v404 = vshrl.u32 %v403, 7
    %v405 = vsub.s32 0, %v404
    %v406 = vrot.slane %v401, %v405
    %v424 = vunpack.c.l.b16 %v385
    %v425 = vunpack.c.l.b16 %v386
    %v426 = vunpack.c.l.b16 %v387
    %v427 = vunpack.c.l.b16 %v388
    %v428 = vunpack.c.l.b16 %v389
    %v429 = vunpack.c.l.b16 %v390
    %v430 = vunpack.c.l.b16 %v391
    %v431 = vunpack.c.l.b16 %v392
    %v432 = vunpack.c.l.b16 %v393
    %v433 = vunpack.c.l.b16 %v394
    %v434 = vunpack.c.l.b16 %v395
    %v435 = vunpack.c.l.b16 %v396
    %v436 = vunpack.c.l.b16 %v397
    %v437 = vunpack.c.l.b16 %v398
    %v438 = vunpack.c.l.b16 %v399
    %v439 = vunpack.c.l.b16 %v400
    %v440 = vpack.c.b16 %v425, %v424
    %v441 = vpack.c.b16 %v427, %v426
    %v442 = vpack.c.b16 %v429, %v428
    %v443 = vpack.c.b16 %v431, %v430
    %v444 = vpack.c.b16 %v433, %v432
    %v445 = vpack.c.b16 %v435, %v434
    %v446 = vpack.c.b16 %v437, %v436
    %v447 = vpack.c.b16 %v439, %v438
    %456 = vmatprep.subr.bf16.mxu0 0
    %457 = vmatpush1.bf16.msra.mxu0 %v447
    %458 = vmatprep.subr.bf16.mxu0 0
    %459 = vmatpush1.bf16.msra.mxu0 %v446
    %460 = vmatprep.subr.bf16.mxu0 0
    %461 = vmatpush1.bf16.msra.mxu0 %v445
    %462 = vmatprep.subr.bf16.mxu0 0
    %463 = vmatpush1.bf16.msra.mxu0 %v444
    %464 = vmatprep.subr.bf16.mxu0 0
    %465 = vmatpush1.bf16.msra.mxu0 %v443
    %466 = vmatprep.subr.bf16.mxu0 0
    %467 = vmatpush1.bf16.msra.mxu0 %v442
    %468 = vmatprep.subr.bf16.mxu0 0
    %469 = vmatpush1.bf16.msra.mxu0 %v441
    %470 = vmatprep.subr.bf16.mxu0 0
    %471 = vmatpush1.bf16.msra.mxu0 %v440
    %472 = vmatprep.subr.bf16.mxu0 0
    %473 = vmatpush2.bf16.msra.mxu0 0
    %474 = vmatprep.subr.bf16.mxu0 0
    %475 = vmatpush2.bf16.msra.mxu0 0
    %476 = vmatprep.subr.bf16.mxu0 0
    %477 = vmatpush2.bf16.msra.mxu0 0
    %478 = vmatprep.subr.bf16.mxu0 0
    %479 = vmatpush2.bf16.msra.mxu0 0
    %480 = vmatprep.subr.bf16.mxu0 0
    %481 = vmatpush2.bf16.msra.mxu0 0
    %482 = vmatprep.subr.bf16.mxu0 0
    %483 = vmatpush2.bf16.msra.mxu0 0
    %484 = vmatprep.subr.bf16.mxu0 0
    %485 = vmatpush2.bf16.msra.mxu0 0
    %486 = vmatprep.subr.bf16.mxu0 0
    %487 = vmatpush2.bf16.msra.mxu0 0
    %488 = vmatprep.mubr.bf16.mxu0 0
    %489 = vmatmul.mubr.bf16.gmra.mxu0 %v384
    %v490 = vpop.f32.mrf.mxu0
    %v491 = vadd.f32 %v406, %v490
    %v492 = vpop.f32.mrf.mxu0
    %v493 = vpop.f32.mrf.mxu0
    %v494 = vadd.f32 %v406, %v493
    %v495 = vpop.f32.mrf.mxu0
    %496 = vdwg.mxu0
    %v497 = vmax.f32 %v491, 0.0
    %v498 = vmax.f32 %v494, 0.0
    %v499 = vpack.c.bf16 %v498, %v497
    %v500 = vld [vmem:[#allocation11] sm:$0xf]
    %v501 = vld [vmem:[#allocation11 + $0x4] sm:$0xf]
    %v502 = vld [vmem:[#allocation11 + $0x8] sm:$0xf]
    %v503 = vld [vmem:[#allocation11 + $0xc] sm:$0xf]
    %v504 = vld [vmem:[#allocation11 + $0x10] sm:$0xf]
    %v505 = vld [vmem:[#allocation11 + $0x14] sm:$0xf]
    %v506 = vld [vmem:[#allocation11 + $0x18] sm:$0xf]
    %v507 = vld [vmem:[#allocation11 + $0x1c] sm:$0xf]
    %v508 = vld [vmem:[#allocation11 + $0x20] sm:$0xf]
    %v509 = vld [vmem:[#allocation11 + $0x24] sm:$0xf]
    %v510 = vld [vmem:[#allocation11 + $0x28] sm:$0xf]
    %v511 = vld [vmem:[#allocation11 + $0x2c] sm:$0xf]
    %v512 = vld [vmem:[#allocation11 + $0x30] sm:$0xf]
    %v513 = vld [vmem:[#allocation11 + $0x34] sm:$0xf]
    %v514 = vld [vmem:[#allocation11 + $0x38] sm:$0xf]
    %v515 = vld [vmem:[#allocation11 + $0x3c] sm:$0xf]
    %v516 = vld [vmem:[%s8] sm:$0x1]
    %v518 = vlaneseq
    %v519 = vshrl.u32 %v518, 7
    %v520 = vsub.s32 0, %v519
    %v521 = vrot.slane %v516, %v520
    %v539 = vunpack.c.l.b16 %v500
    %v540 = vunpack.c.l.b16 %v501
    %v541 = vunpack.c.l.b16 %v502
    %v542 = vunpack.c.l.b16 %v503
    %v543 = vunpack.c.l.b16 %v504
    %v544 = vunpack.c.l.b16 %v505
    %v545 = vunpack.c.l.b16 %v506
    %v546 = vunpack.c.l.b16 %v507
    %v547 = vunpack.c.l.b16 %v508
    %v548 = vunpack.c.l.b16 %v509
    %v549 = vunpack.c.l.b16 %v510
    %v550 = vunpack.c.l.b16 %v511
    %v551 = vunpack.c.l.b16 %v512
    %v552 = vunpack.c.l.b16 %v513
    %v553 = vunpack.c.l.b16 %v514
    %v554 = vunpack.c.l.b16 %v515
    %v555 = vpack.c.b16 %v540, %v539
    %v556 = vpack.c.b16 %v542, %v541
    %v557 = vpack.c.b16 %v544, %v543
    %v558 = vpack.c.b16 %v546, %v545
    %v559 = vpack.c.b16 %v548, %v547
    %v560 = vpack.c.b16 %v550, %v549
    %v561 = vpack.c.b16 %v552, %v551
    %v562 = vpack.c.b16 %v554, %v553
    %571 = vmatprep.subr.bf16.mxu0 0
    %572 = vmatpush1.bf16.msra.mxu0 %v562
    %573 = vmatprep.subr.bf16.mxu0 0
    %574 = vmatpush1.bf16.msra.mxu0 %v561
    %575 = vmatprep.subr.bf16.mxu0 0
    %576 = vmatpush1.bf16.msra.mxu0 %v560
    %577 = vmatprep.subr.bf16.mxu0 0
    %578 = vmatpush1.bf16.msra.mxu0 %v559
    %579 = vmatprep.subr.bf16.mxu0 0
    %580 = vmatpush1.bf16.msra.mxu0 %v558
    %581 = vmatprep.subr.bf16.mxu0 0
    %582 = vmatpush1.bf16.msra.mxu0 %v557
    %583 = vmatprep.subr.bf16.mxu0 0
    %584 = vmatpush1.bf16.msra.mxu0 %v556
    %585 = vmatprep.subr.bf16.mxu0 0
    %586 = vmatpush1.bf16.msra.mxu0 %v555
    %587 = vmatprep.subr.bf16.mxu0 0
    %588 = vmatpush2.bf16.msra.mxu0 0
    %589 = vmatprep.subr.bf16.mxu0 0
    %590 = vmatpush2.bf16.msra.mxu0 0
    %591 = vmatprep.subr.bf16.mxu0 0
    %592 = vmatpush2.bf16.msra.mxu0 0
    %593 = vmatprep.subr.bf16.mxu0 0
    %594 = vmatpush2.bf16.msra.mxu0 0
    %595 = vmatprep.subr.bf16.mxu0 0
    %596 = vmatpush2.bf16.msra.mxu0 0
    %597 = vmatprep.subr.bf16.mxu0 0
    %598 = vmatpush2.bf16.msra.mxu0 0
    %599 = vmatprep.subr.bf16.mxu0 0
    %600 = vmatpush2.bf16.msra.mxu0 0
    %601 = vmatprep.subr.bf16.mxu0 0
    %602 = vmatpush2.bf16.msra.mxu0 0
    %603 = vmatprep.mubr.bf16.mxu0 0
    %604 = vmatmul.mubr.bf16.gmra.mxu0 %v499
    %v605 = vpop.f32.mrf.mxu0
    %v606 = vadd.f32 %v521, %v605
    %v607 = vpop.f32.mrf.mxu0
    %v608 = vpop.f32.mrf.mxu0
    %v609 = vadd.f32 %v521, %v608
    %v610 = vpop.f32.mrf.mxu0
    %611 = vdwg.mxu0
    %612 = vmax.xlane.f32.xlu0 %v606
    %v613 = vpop.xlane.xlu0 %612
    %614 = vmax.xlane.f32.xlu0 %v609
    %v615 = vpop.xlane.xlu0 %614
    %v616 = vsub.f32 %v606, %v613
    %v617 = vsub.f32 %v609, %v615
    %v618 = vmul.f32 %v616, 1.442695
    %v619 = vpow.pop %v618
    %v620 = vmul.f32 %v617, 1.442695
    %v621 = vpow.pop %v620
    %622 = vadd.xlane.f32.xlu0 %v619
    %v623 = vpop.xlane.xlu0 %622
    %624 = vadd.xlane.f32.xlu0 %v621
    %v625 = vpop.xlane.xlu0 %624
    %v626 = vrcp.pop %v623
    %v627 = vmul.f32 %v619, %v626
    %v628 = vrcp.pop %v625
    %v629 = vmul.f32 %v621, %v628
    %630 = vst [vmem:[#allocation13] sm:$0xff] %v627
    %631 = vst [vmem:[#allocation13 + $0x8] sm:$0xff] %v629
    // Predicated region
    $region62: #{mlp_forward.1} parent=1 // pred_check
      _
    $region63: #{mlp_forward.1} parent=1 // pred_check_branch
      %633 = sbr.rel (0) target = $region65
    $region64: #{mlp_forward.1} parent=1 // pred_region
      %s635 = ssub.s32 256, 256
      %636 = vsyncadd [#allocation4], %s635
      %s637 = sshll.u32 [#allocation13], 4
      %s638 = int_to_ptr.vmem [resolvable:$true] %s637
      %643 = dma.vmem_to_hbm [thread:$0]  %s638, 256, %s9, [#allocation4], 128, 128, 8
    $region65: #{mlp_forward.1} parent=1 // pred_fallthru
      _
    // Predicated region
    $region66: #{mlp_forward.1} parent=1 // pred_check
      _
    $region67: #{mlp_forward.1} parent=1 // pred_check_branch
      %645 = sbr.rel (0) target = $region69
    $region68: #{mlp_forward.1} parent=1 // pred_region
      %646 = dma.done [#allocation4], 256
    $region69: #{mlp_forward.1} parent=1 // pred_fallthru
      _
    %647 = vsyncpa [#allocation3], 1
    %648 = vsyncpa [#allocation6], 1
    %649 = vsyncpa [#allocation9], 1
    %650 = vsyncpa [#allocation12], 1
    %651 = vsyncpa [#allocation4], 1

</llo_original>
